<compile_context>
chip_gen: v7x
topology: tpu7x:2x2x1
jax: 0.10.0
libtpu: 0.0.40
codegen_flags: <defaults>
</compile_context>

<pallas_src>
import functools

import jax
import jax.numpy as jnp
from jax.experimental import pallas as pl
from jax.experimental.pallas import tpu as pltpu

C1 = 0.01 ** 2
C2 = 0.03 ** 2

# Rough peak live VMEM per grid step, in units of one (B, H*W) f32 block:
# ~6 double-buffered I/O blocks (x, y, out) + ~14 f32 compute temporaries.
_LIVE_BLOCK_FACTOR = 20


def _ssim_kernel(mask_ref, x_ref, y_ref, o_ref, *, w, hw):
    x = x_ref[...].astype(jnp.float32)
    y = y_ref[...].astype(jnp.float32)

    # (1, HW) bool border rows; jnp.where broadcasts them over (B, HW) operands,
    # so no block-sized int32 broadcasts are materialized.
    m = mask_ref[...]
    fc = m[0:1, :] != 0   # first column of a plane
    lc = m[1:2, :] != 0   # last column
    fr = m[2:3, :] != 0   # first row
    lr = m[3:4, :] != 0   # last row

    # ---- horizontal 3-tap (flat offsets +-1): rolls/selects hoisted onto x, y.
    xl = pltpu.roll(x, shift=1, axis=1)        # x[f-1]
    xr = pltpu.roll(x, shift=hw - 1, axis=1)   # x[f+1]
    yl = pltpu.roll(y, shift=1, axis=1)
    yr = pltpu.roll(y, shift=hw - 1, axis=1)
    xL = jnp.where(fc, xr, xl)                 # reflected left neighbour of x
    xR = jnp.where(lc, xl, xr)                 # reflected right neighbour of x
    yL = jnp.where(fc, yr, yl)
    yR = jnp.where(lc, yl, yr)

    h_x = x + xL + xR
    h_y = y + yL + yR
    h_xx = x * x + xL * xL + xR * xR
    h_yy = y * y + yL * yL + yR * yR
    h_xy = x * y + xL * yL + xR * yR

    # ---- vertical 3-tap (flat offsets +-W) with reflection at first/last row.
    # (When W % 128 == 0 these rolls are cheap lane-tile-granular moves.)
    def vsum(h):
        up = pltpu.roll(h, shift=w, axis=1)        # h[f-W]
        dn = pltpu.roll(h, shift=hw - w, axis=1)   # h[f+W]
        return h + jnp.where(fr, dn, up) + jnp.where(lr, up, dn)

    s_x = vsum(h_x)
    s_y = vsum(h_y)
    s_xx = vsum(h_xx)
    s_yy = vsum(h_yy)
    s_xy = vsum(h_xy)

    # ---- SSIM with the 1/9 pooling normalization folded into constants.
    # mu_x = s_x / 9, sigma_x = s_xx / 9 - s_x^2 / 81, etc.
    p = s_x * s_y            # 81 * mu_x * mu_y
    q = s_x * s_x + s_y * s_y  # 81 * (mu_x^2 + mu_y^2)

    c_1_9 = jnp.float32(1.0 / 9.0)
    c_1_81 = jnp.float32(1.0 / 81.0)
    c_2_9 = jnp.float32(2.0 / 9.0)
    c_2_81 = jnp.float32(2.0 / 81.0)

    p2 = c_2_81 * p          # 2 * mu_x * mu_y
    q81 = c_1_81 * q         # mu_x^2 + mu_y^2
    ssim_n = (p2 + C1) * (c_2_9 * s_xy - p2 + C2)
    ssim_d = (q81 + C1) * (c_1_9 * (s_xx + s_yy) - q81 + C2)

    # EUP approximate reciprocal + one Newton-Raphson step (~1e-6 rel error):
    # keeps the divide off the (potentially binding) VPU slot on v6e/v7x while
    # staying well inside the 1e-5 tolerance vs the exact-divide reference.
    r = pl.reciprocal(ssim_d, approx=True)
    r = r * (2.0 - ssim_d * r)

    out = (1.0 - ssim_n * r) * 0.5
    o_ref[...] = jnp.clip(out, 0.0, 1.0).astype(o_ref.dtype)


def _device_budget():
    """(per-input-block byte budget, vmem_limit_bytes) per TPU generation."""
    try:
        kind = jax.devices()[0].device_kind.lower()
    except Exception:  # pragma: no cover - defensive
        kind = ""
    if "v5" in kind or "v6" in kind:
        # 128 MiB physical VMEM: ~3.5 MiB input blocks amortize the ~0.35 us
        # per-grid-step overhead to a few percent and keep the DMA pipe full.
        return 3_670_016, 96 * 1024 * 1024
    # v7x has only 64 MiB VMEM per TensorCore (and unknown chips get the
    # conservative setting): ~1.75 MiB blocks x ~20 live copies < 56 MiB.
    return 1_835_008, 56 * 1024 * 1024


def _pick_plane_batch(nc, hw, block_budget_bytes):
    """Planes per grid step.

    Constraints:
      * B divides N*C and is a multiple of 8 (or equals the full N*C extent)
        so the (8, 128) second-minor tiling rule holds.
      * B * H*W * 4 stays within the per-block budget (the budget already
        accounts for the ~20x live-footprint expansion from double-buffered
        I/O plus in-kernel f32 temporaries).
      * Prefer grid = N*C // B >= 2 so the 'parallel' grid axis can be split
        across v7x's two TensorCores.
    """
    bytes_per_plane = hw * 4
    max_b = max(1, block_budget_bytes // bytes_per_plane)

    if nc < 8 and nc <= max_b:
        return nc  # tiny problem: full extent is legal and fits

    candidates = [b for b in range(8, min(max_b, nc) + 1, 8) if nc % b == 0]
    if candidates:
        non_full = [b for b in candidates if b < nc]   # keep grid >= 2 if possible
        pool = non_full if non_full else candidates
        return max(pool)

    if nc <= max_b:
        return nc  # no multiple-of-8 divisor, but full extent fits the budget

    # H*W is too large for even an 8-plane block under the budget: fall back to
    # the smallest legal multiple-of-8 divisor rather than the full N*C extent.
    # TODO(synk): for very large H*W, tile the H dimension with a 1-row halo
    # instead of batching whole planes.
    for b in range(8, nc, 8):
        if nc % b == 0:
            return b
    return nc


def ssim(x, y, *, plane_batch=None):
    """SSIM loss matching the PyTorch SSIM module. x, y: (N, C, H, W).

    Accepts float32 or bfloat16 inputs; compute is f32 internally and the
    output matches the input dtype (bf16 I/O halves HBM traffic on v5e).
    """
    assert x.shape == y.shape and x.ndim == 4
    N, C, H, W = x.shape
    assert H >= 2 and W >= 2, "ReflectionPad2d(1) requires H, W >= 2"
    NC, HW = N * C, H * W

    block_budget, vmem_limit = _device_budget()

    # Pure metadata reshapes — no HBM traffic (reflection pad is in-kernel).
    xf = x.reshape(NC, HW)
    yf = y.reshape(NC, HW)

    # Border masks over the flattened plane (tiny, constant block index so they
    # stay resident in VMEM across grid steps).
    idx = jnp.arange(HW, dtype=jnp.int32)
    col = idx % W
    row = idx // W
    masks = jnp.stack(
        [col == 0, col == W - 1, row == 0, row == H - 1]
    ).astype(jnp.int32)  # (4, HW)

    B = plane_batch if plane_batch is not None else _pick_plane_batch(
        NC, HW, block_budget)
    assert NC % B == 0
    assert B % 8 == 0 or B == NC, "block second-minor must be 8-aligned or full"

    out = pl.pallas_call(
        functools.partial(_ssim_kernel, w=W, hw=HW),
        out_shape=jax.ShapeDtypeStruct((NC, HW), x.dtype),
        grid_spec=pltpu.PrefetchScalarGridSpec(
            num_scalar_prefetch=0,
            grid=(NC // B,),
            in_specs=[
                pl.BlockSpec((4, HW), lambda i: (0, 0)),   # masks (resident)
                pl.BlockSpec((B, HW), lambda i: (i, 0)),
                pl.BlockSpec((B, HW), lambda i: (i, 0)),
            ],
            out_specs=pl.BlockSpec((B, HW), lambda i: (i, 0)),
        ),
        compiler_params=pltpu.CompilerParams(
            dimension_semantics=("parallel",),   # v7x: split grid over 2 TCs
            vmem_limit_bytes=vmem_limit,
        ),
    )(masks, xf, yf)

    return out.reshape(N, C, H, W)


def _ssim_ref(x, y):
    """Pure-JAX reference matching the PyTorch module."""
    def avgpool3(a):
        n, c, h, w = a.shape
        acc = jnp.zeros((n, c, h - 2, w - 2), a.dtype)
        for di in range(3):
            for dj in range(3):
                acc = acc + a[:, :, di:di + h - 2, dj:dj + w - 2]
        return acc / 9.0

    xp = jnp.pad(x, ((0, 0), (0, 0), (1, 1), (1, 1)), mode="reflect")
    yp = jnp.pad(y, ((0, 0), (0, 0), (1, 1), (1, 1)), mode="reflect")
    mu_x = avgpool3(xp)
    mu_y = avgpool3(yp)
    sigma_x = avgpool3(xp ** 2) - mu_x ** 2
    sigma_y = avgpool3(yp ** 2) - mu_y ** 2
    sigma_xy = avgpool3(xp * yp) - mu_x * mu_y
    n = (2 * mu_x * mu_y + C1) * (2 * sigma_xy + C2)
    d = (mu_x ** 2 + mu_y ** 2 + C1) * (sigma_x + sigma_y + C2)
    return jnp.clip((1 - n / d) / 2, 0.0, 1.0)


if __name__ == "__main__":
    key = jax.random.PRNGKey(0)
    kx, ky = jax.random.split(key)
    N, C, H, W = 2, 4, 16, 16
    x = jax.random.uniform(kx, (N, C, H, W), dtype=jnp.float32)
    y = jax.random.uniform(ky, (N, C, H, W), dtype=jnp.float32)

    out = jax.block_until_ready(ssim(x, y))
    ref = jax.block_until_ready(_ssim_ref(x, y))

    assert out.shape == (N, C, H, W)
    assert jnp.allclose(out, ref, atol=1e-5, rtol=1e-5)
    print("KERNEL_OK")
</pallas_src>

<mosaic_0001>
module attributes {stable_mosaic.version = 11 : i64} {
  func.func @_ssim_kernel(%arg0: i32, %arg1: memref<4x256xi32, #tpu.memory_space<vmem>>, %arg2: memref<8x256xf32, #tpu.memory_space<vmem>>, %arg3: memref<8x256xf32, #tpu.memory_space<vmem>>, %arg4: memref<8x256xf32, #tpu.memory_space<vmem>>) attributes {dimension_semantics = [#tpu.dimension_semantics<parallel>], iteration_bounds = array<i64: 1>, scalar_prefetch = 0 : i64, scratch_operands = 0 : i64, tpu.core_type = #tpu.core_type<tc>, window_params = [{pipeline_mode = #tpu.pipeline_mode<synchronous>, transform_indices = @transform_0, window_bounds = array<i64: 4, 256>}, {transform_indices = @transform_1, window_bounds = array<i64: 8, 256>}, {transform_indices = @transform_2, window_bounds = array<i64: 8, 256>}, {transform_indices = @transform_3, window_bounds = array<i64: 8, 256>}]} {
    %c0 = arith.constant 0 : index
    %c0_0 = arith.constant 0 : index
    %0 = vector.load %arg2[%c0, %c0_0] : memref<8x256xf32, #tpu.memory_space<vmem>>, vector<8x256xf32>
    %c0_1 = arith.constant 0 : index
    %c0_2 = arith.constant 0 : index
    %1 = vector.load %arg3[%c0_1, %c0_2] : memref<8x256xf32, #tpu.memory_space<vmem>>, vector<8x256xf32>
    %c0_3 = arith.constant 0 : index
    %c0_4 = arith.constant 0 : index
    %2 = vector.load %arg1[%c0_3, %c0_4] : memref<4x256xi32, #tpu.memory_space<vmem>>, vector<4x256xi32>
    %3 = vector.extract_strided_slice %2 {offsets = [0, 0], sizes = [1, 256], strides = [1, 1]} : vector<4x256xi32> to vector<1x256xi32>
    %c0_i32 = arith.constant 0 : i32
    %4 = vector.broadcast %c0_i32 : i32 to vector<1x256xi32>
    %5 = arith.cmpi ne, %3, %4 : vector<1x256xi32>
    %6 = vector.extract_strided_slice %2 {offsets = [1, 0], sizes = [1, 256], strides = [1, 1]} : vector<4x256xi32> to vector<1x256xi32>
    %c0_i32_5 = arith.constant 0 : i32
    %7 = vector.broadcast %c0_i32_5 : i32 to vector<1x256xi32>
    %8 = arith.cmpi ne, %6, %7 : vector<1x256xi32>
    %9 = vector.extract_strided_slice %2 {offsets = [2, 0], sizes = [1, 256], strides = [1, 1]} : vector<4x256xi32> to vector<1x256xi32>
    %c0_i32_6 = arith.constant 0 : i32
    %10 = vector.broadcast %c0_i32_6 : i32 to vector<1x256xi32>
    %11 = arith.cmpi ne, %9, %10 : vector<1x256xi32>
    %12 = vector.extract_strided_slice %2 {offsets = [3, 0], sizes = [1, 256], strides = [1, 1]} : vector<4x256xi32> to vector<1x256xi32>
    %c0_i32_7 = arith.constant 0 : i32
    %13 = vector.broadcast %c0_i32_7 : i32 to vector<1x256xi32>
    %14 = arith.cmpi ne, %12, %13 : vector<1x256xi32>
    %c1_i32 = arith.constant 1 : i32
    %15 = tpu.dynamic_rotate %0 by %c1_i32 dim 1 : vector<8x256xf32>, i32 -> vector<8x256xf32>
    %c255_i32 = arith.constant 255 : i32
    %16 = tpu.dynamic_rotate %0 by %c255_i32 dim 1 : vector<8x256xf32>, i32 -> vector<8x256xf32>
    %c1_i32_8 = arith.constant 1 : i32
    %17 = tpu.dynamic_rotate %1 by %c1_i32_8 dim 1 : vector<8x256xf32>, i32 -> vector<8x256xf32>
    %c255_i32_9 = arith.constant 255 : i32
    %18 = tpu.dynamic_rotate %1 by %c255_i32_9 dim 1 : vector<8x256xf32>, i32 -> vector<8x256xf32>
    %19 = vector.shape_cast %5 : vector<1x256xi1> to vector<1x256xi1>
    %20 = vector.broadcast %19 : vector<1x256xi1> to vector<8x256xi1>
    %21 = arith.select %20, %16, %15 : vector<8x256xi1>, vector<8x256xf32>
    %22 = vector.shape_cast %8 : vector<1x256xi1> to vector<1x256xi1>
    %23 = vector.broadcast %22 : vector<1x256xi1> to vector<8x256xi1>
    %24 = arith.select %23, %15, %16 : vector<8x256xi1>, vector<8x256xf32>
    %25 = vector.shape_cast %5 : vector<1x256xi1> to vector<1x256xi1>
    %26 = vector.broadcast %25 : vector<1x256xi1> to vector<8x256xi1>
    %27 = arith.select %26, %18, %17 : vector<8x256xi1>, vector<8x256xf32>
    %28 = vector.shape_cast %8 : vector<1x256xi1> to vector<1x256xi1>
    %29 = vector.broadcast %28 : vector<1x256xi1> to vector<8x256xi1>
    %30 = arith.select %29, %17, %18 : vector<8x256xi1>, vector<8x256xf32>
    %31 = arith.addf %0, %21 : vector<8x256xf32>
    %32 = arith.addf %31, %24 : vector<8x256xf32>
    %33 = arith.addf %1, %27 : vector<8x256xf32>
    %34 = arith.addf %33, %30 : vector<8x256xf32>
    %35 = arith.mulf %0, %0 : vector<8x256xf32>
    %36 = arith.mulf %21, %21 : vector<8x256xf32>
    %37 = arith.addf %35, %36 : vector<8x256xf32>
    %38 = arith.mulf %24, %24 : vector<8x256xf32>
    %39 = arith.addf %37, %38 : vector<8x256xf32>
    %40 = arith.mulf %1, %1 : vector<8x256xf32>
    %41 = arith.mulf %27, %27 : vector<8x256xf32>
    %42 = arith.addf %40, %41 : vector<8x256xf32>
    %43 = arith.mulf %30, %30 : vector<8x256xf32>
    %44 = arith.addf %42, %43 : vector<8x256xf32>
    %45 = arith.mulf %0, %1 : vector<8x256xf32>
    %46 = arith.mulf %21, %27 : vector<8x256xf32>
    %47 = arith.addf %45, %46 : vector<8x256xf32>
    %48 = arith.mulf %24, %30 : vector<8x256xf32>
    %49 = arith.addf %47, %48 : vector<8x256xf32>
    %c16_i32 = arith.constant 16 : i32
    %50 = tpu.dynamic_rotate %32 by %c16_i32 dim 1 : vector<8x256xf32>, i32 -> vector<8x256xf32>
    %c240_i32 = arith.constant 240 : i32
    %51 = tpu.dynamic_rotate %32 by %c240_i32 dim 1 : vector<8x256xf32>, i32 -> vector<8x256xf32>
    %52 = vector.shape_cast %11 : vector<1x256xi1> to vector<1x256xi1>
    %53 = vector.broadcast %52 : vector<1x256xi1> to vector<8x256xi1>
    %54 = arith.select %53, %51, %50 : vector<8x256xi1>, vector<8x256xf32>
    %55 = arith.addf %32, %54 : vector<8x256xf32>
    %56 = vector.shape_cast %14 : vector<1x256xi1> to vector<1x256xi1>
    %57 = vector.broadcast %56 : vector<1x256xi1> to vector<8x256xi1>
    %58 = arith.select %57, %50, %51 : vector<8x256xi1>, vector<8x256xf32>
    %59 = arith.addf %55, %58 : vector<8x256xf32>
    %c16_i32_10 = arith.constant 16 : i32
    %60 = tpu.dynamic_rotate %34 by %c16_i32_10 dim 1 : vector<8x256xf32>, i32 -> vector<8x256xf32>
    %c240_i32_11 = arith.constant 240 : i32
    %61 = tpu.dynamic_rotate %34 by %c240_i32_11 dim 1 : vector<8x256xf32>, i32 -> vector<8x256xf32>
    %62 = vector.shape_cast %11 : vector<1x256xi1> to vector<1x256xi1>
    %63 = vector.broadcast %62 : vector<1x256xi1> to vector<8x256xi1>
    %64 = arith.select %63, %61, %60 : vector<8x256xi1>, vector<8x256xf32>
    %65 = arith.addf %34, %64 : vector<8x256xf32>
    %66 = vector.shape_cast %14 : vector<1x256xi1> to vector<1x256xi1>
    %67 = vector.broadcast %66 : vector<1x256xi1> to vector<8x256xi1>
    %68 = arith.select %67, %60, %61 : vector<8x256xi1>, vector<8x256xf32>
    %69 = arith.addf %65, %68 : vector<8x256xf32>
    %c16_i32_12 = arith.constant 16 : i32
    %70 = tpu.dynamic_rotate %39 by %c16_i32_12 dim 1 : vector<8x256xf32>, i32 -> vector<8x256xf32>
    %c240_i32_13 = arith.constant 240 : i32
    %71 = tpu.dynamic_rotate %39 by %c240_i32_13 dim 1 : vector<8x256xf32>, i32 -> vector<8x256xf32>
    %72 = vector.shape_cast %11 : vector<1x256xi1> to vector<1x256xi1>
    %73 = vector.broadcast %72 : vector<1x256xi1> to vector<8x256xi1>
    %74 = arith.select %73, %71, %70 : vector<8x256xi1>, vector<8x256xf32>
    %75 = arith.addf %39, %74 : vector<8x256xf32>
    %76 = vector.shape_cast %14 : vector<1x256xi1> to vector<1x256xi1>
    %77 = vector.broadcast %76 : vector<1x256xi1> to vector<8x256xi1>
    %78 = arith.select %77, %70, %71 : vector<8x256xi1>, vector<8x256xf32>
    %79 = arith.addf %75, %78 : vector<8x256xf32>
    %c16_i32_14 = arith.constant 16 : i32
    %80 = tpu.dynamic_rotate %44 by %c16_i32_14 dim 1 : vector<8x256xf32>, i32 -> vector<8x256xf32>
    %c240_i32_15 = arith.constant 240 : i32
    %81 = tpu.dynamic_rotate %44 by %c240_i32_15 dim 1 : vector<8x256xf32>, i32 -> vector<8x256xf32>
    %82 = vector.shape_cast %11 : vector<1x256xi1> to vector<1x256xi1>
    %83 = vector.broadcast %82 : vector<1x256xi1> to vector<8x256xi1>
    %84 = arith.select %83, %81, %80 : vector<8x256xi1>, vector<8x256xf32>
    %85 = arith.addf %44, %84 : vector<8x256xf32>
    %86 = vector.shape_cast %14 : vector<1x256xi1> to vector<1x256xi1>
    %87 = vector.broadcast %86 : vector<1x256xi1> to vector<8x256xi1>
    %88 = arith.select %87, %80, %81 : vector<8x256xi1>, vector<8x256xf32>
    %89 = arith.addf %85, %88 : vector<8x256xf32>
    %c16_i32_16 = arith.constant 16 : i32
    %90 = tpu.dynamic_rotate %49 by %c16_i32_16 dim 1 : vector<8x256xf32>, i32 -> vector<8x256xf32>
    %c240_i32_17 = arith.constant 240 : i32
    %91 = tpu.dynamic_rotate %49 by %c240_i32_17 dim 1 : vector<8x256xf32>, i32 -> vector<8x256xf32>
    %92 = vector.shape_cast %11 : vector<1x256xi1> to vector<1x256xi1>
    %93 = vector.broadcast %92 : vector<1x256xi1> to vector<8x256xi1>
    %94 = arith.select %93, %91, %90 : vector<8x256xi1>, vector<8x256xf32>
    %95 = arith.addf %49, %94 : vector<8x256xf32>
    %96 = vector.shape_cast %14 : vector<1x256xi1> to vector<1x256xi1>
    %97 = vector.broadcast %96 : vector<1x256xi1> to vector<8x256xi1>
    %98 = arith.select %97, %90, %91 : vector<8x256xi1>, vector<8x256xf32>
    %99 = arith.addf %95, %98 : vector<8x256xf32>
    %100 = arith.mulf %59, %69 : vector<8x256xf32>
    %101 = arith.mulf %59, %59 : vector<8x256xf32>
    %102 = arith.mulf %69, %69 : vector<8x256xf32>
    %103 = arith.addf %101, %102 : vector<8x256xf32>
    %cst = arith.constant 0.0246913582 : f32
    %104 = vector.broadcast %cst : f32 to vector<8x256xf32>
    %105 = arith.mulf %104, %100 : vector<8x256xf32>
    %cst_18 = arith.constant 0.0123456791 : f32
    %106 = vector.broadcast %cst_18 : f32 to vector<8x256xf32>
    %107 = arith.mulf %106, %103 : vector<8x256xf32>
    %cst_19 = arith.constant 9.99999974E-5 : f32
    %108 = vector.broadcast %cst_19 : f32 to vector<8x256xf32>
    %109 = arith.addf %105, %108 : vector<8x256xf32>
    %cst_20 = arith.constant 0.222222224 : f32
    %110 = vector.broadcast %cst_20 : f32 to vector<8x256xf32>
    %111 = arith.mulf %110, %99 : vector<8x256xf32>
    %112 = arith.subf %111, %105 : vector<8x256xf32>
    %cst_21 = arith.constant 8.99999984E-4 : f32
    %113 = vector.broadcast %cst_21 : f32 to vector<8x256xf32>
    %114 = arith.addf %112, %113 : vector<8x256xf32>
    %115 = arith.mulf %109, %114 : vector<8x256xf32>
    %cst_22 = arith.constant 9.99999974E-5 : f32
    %116 = vector.broadcast %cst_22 : f32 to vector<8x256xf32>
    %117 = arith.addf %107, %116 : vector<8x256xf32>
    %118 = arith.addf %79, %89 : vector<8x256xf32>
    %cst_23 = arith.constant 0.111111112 : f32
    %119 = vector.broadcast %cst_23 : f32 to vector<8x256xf32>
    %120 = arith.mulf %119, %118 : vector<8x256xf32>
    %121 = arith.subf %120, %107 : vector<8x256xf32>
    %cst_24 = arith.constant 8.99999984E-4 : f32
    %122 = vector.broadcast %cst_24 : f32 to vector<8x256xf32>
    %123 = arith.addf %121, %122 : vector<8x256xf32>
    %124 = arith.mulf %117, %123 : vector<8x256xf32>
    %125 = tpu.reciprocal %124 {approx = true} : vector<8x256xf32> -> vector<8x256xf32>
    %126 = arith.mulf %124, %125 : vector<8x256xf32>
    %cst_25 = arith.constant 2.000000e+00 : f32
    %127 = vector.broadcast %cst_25 : f32 to vector<8x256xf32>
    %128 = arith.subf %127, %126 : vector<8x256xf32>
    %129 = arith.mulf %125, %128 : vector<8x256xf32>
    %130 = arith.mulf %115, %129 : vector<8x256xf32>
    %cst_26 = arith.constant 1.000000e+00 : f32
    %131 = vector.broadcast %cst_26 : f32 to vector<8x256xf32>
    %132 = arith.subf %131, %130 : vector<8x256xf32>
    %cst_27 = arith.constant 5.000000e-01 : f32
    %133 = vector.broadcast %cst_27 : f32 to vector<8x256xf32>
    %134 = arith.mulf %132, %133 : vector<8x256xf32>
    %cst_28 = arith.constant 0.000000e+00 : f32
    %cst_29 = arith.constant 1.000000e+00 : f32
    %135 = vector.broadcast %cst_28 : f32 to vector<8x256xf32>
    %136 = arith.maximumf %135, %134 : vector<8x256xf32>
    %137 = vector.broadcast %cst_29 : f32 to vector<8x256xf32>
    %138 = arith.minimumf %137, %136 : vector<8x256xf32>
    %c0_30 = arith.constant 0 : index
    %c0_31 = arith.constant 0 : index
    %139 = vector.load %arg4[%c0_30, %c0_31] : memref<8x256xf32, #tpu.memory_space<vmem>>, vector<8x256xf32>
    tpu.vector_store %arg4[%c0_30, %c0_31], %138 {strides = array<i32>} : memref<8x256xf32, #tpu.memory_space<vmem>>, vector<8x256xf32>,
    return
  }
  func.func @transform_0(%arg0: i32) -> (i32, i32) {
    %c0_i32 = arith.constant 0 : i32
    %c0_i32_0 = arith.constant 0 : i32
    %c0_i32_1 = arith.constant 0 : i32
    return %c0_i32, %c0_i32_0 : i32, i32
  }
  func.func @transform_1(%arg0: i32) -> (i32, i32) {
    %c0_i32 = arith.constant 0 : i32
    %c0_i32_0 = arith.constant 0 : i32
    return %arg0, %c0_i32 : i32, i32
  }
  func.func @transform_2(%arg0: i32) -> (i32, i32) {
    %c0_i32 = arith.constant 0 : i32
    %c0_i32_0 = arith.constant 0 : i32
    return %arg0, %c0_i32 : i32, i32
  }
  func.func @transform_3(%arg0: i32) -> (i32, i32) {
    %c0_i32 = arith.constant 0 : i32
    %c0_i32_0 = arith.constant 0 : i32
    return %arg0, %c0_i32 : i32, i32
  }
}

</mosaic_0001>

<llo_original>
// kernel: tpu_custom_call.1
$region0: #{tpu_custom_call.1}
  #allocation0 [shape = 'u32[]', space=smem, size = 0x4, offset = 0x4, fixed_abs, tag = 'smem constant byte address 0x4 - core index']
  #allocation1 [shape = 'u32[144,128]{1,0:T(1,128)}', space=vmem, size = 0x12000, scoped, tag = 'internal scratch']
  %s0 = inlined_call_operand.hbm [shape: s32[4,256], index: 0, kind: input, shape index: {}]
  %s1 = inlined_call_operand.hbm [shape: f32[8,256], index: 1, kind: input, shape index: {}]
  %s2 = inlined_call_operand.hbm [shape: f32[8,256], index: 2, kind: input, shape index: {}]
  %s3 = inlined_call_operand.hbm [shape: f32[8,256], index: 3, kind: output, shape index: {}]
  %s4 = sld [smem:[#allocation0]]
  $region34: #{tpu_custom_call.1} parent=0
    _
  %s6 = ssub.s32 1, %s4
  %s7 = scalar_select 0, %s6, %s4
  $region1: #{tpu_custom_call.1} parent=0
    #allocation2 [shape = 'u8[4096]{0}', space=vmem, size = 0x1000, scoped, tag = 'input window, operand 0, single buffered']
    #allocation3 [shape = 's32[1]{0}', space=sflag, size = 0x4, scoped, tag = 'scoped memory for tpu_custom_call.1']
    #allocation4 [shape = 's32[1]{0}', space=sflag, size = 0x4, scoped, tag = 'scoped memory for tpu_custom_call.1']
    #allocation5 [shape = 'u8[8192]{0}', space=vmem, size = 0x2000, scoped, tag = 'input window, operand 1, single buffered']
    #allocation6 [shape = 's32[1]{0}', space=sflag, size = 0x4, scoped, tag = 'scoped memory for tpu_custom_call.1']
    #allocation7 [shape = 'u8[8192]{0}', space=vmem, size = 0x2000, scoped, tag = 'input window, operand 2, single buffered']
    #allocation8 [shape = 'u8[8192]{0}', space=vmem, size = 0x2000, scoped, tag = 'output window, operand 0, single buffered']
    %8 = vsyncpa [#allocation3], 0
    %9 = vsyncpa [#allocation6], 0
    %10 = vsyncpa [#allocation4], 0
    // Predicated region
    $region2: #{tpu_custom_call.1} parent=1 // pred_check
      _
    $region3: #{tpu_custom_call.1} parent=1 // pred_check_branch
      %12 = sbr.rel (0) target = $region5
    $region4: #{tpu_custom_call.1} parent=1 // pred_region
      %s14 = ssub.s32 128, 128
      %15 = vsyncadd [#allocation3], %s14
      %s17 = sshll.u32 [#allocation2], 4
      %s18 = int_to_ptr.vmem [resolvable:$true] %s17
      %20 = dma.hbm_to_vmem [thread:$0]  %s0, 128, %s18, [#allocation3]
    $region5: #{tpu_custom_call.1} parent=1 // pred_fallthru
      _
    // Predicated region
    $region6: #{tpu_custom_call.1} parent=1 // pred_check
      _
    $region7: #{tpu_custom_call.1} parent=1 // pred_check_branch
      %22 = sbr.rel (0) target = $region9
    $region8: #{tpu_custom_call.1} parent=1 // pred_region
      %s24 = ssub.s32 256, 256
      %25 = vsyncadd [#allocation6], %s24
      %s27 = sshll.u32 [#allocation5], 4
      %s28 = int_to_ptr.vmem [resolvable:$true] %s27
      %30 = dma.hbm_to_vmem [thread:$0]  %s1, 256, %s28, [#allocation6]
    $region9: #{tpu_custom_call.1} parent=1 // pred_fallthru
      _
    // Predicated region
    $region10: #{tpu_custom_call.1} parent=1 // pred_check
      _
    $region11: #{tpu_custom_call.1} parent=1 // pred_check_branch
      %32 = sbr.rel (0) target = $region13
    $region12: #{tpu_custom_call.1} parent=1 // pred_region
      %s34 = ssub.s32 256, 256
      %35 = vsyncadd [#allocation6], %s34
      %s37 = sshll.u32 [#allocation7], 4
      %s38 = int_to_ptr.vmem [resolvable:$true] %s37
      %40 = dma.hbm_to_vmem [thread:$0]  %s2, 256, %s38, [#allocation6]
    $region13: #{tpu_custom_call.1} parent=1 // pred_fallthru
      _
    // Predicated region
    $region14: #{tpu_custom_call.1} parent=1 // pred_check
      _
    $region15: #{tpu_custom_call.1} parent=1 // pred_check_branch
      %42 = sbr.rel (0) target = $region17
    $region16: #{tpu_custom_call.1} parent=1 // pred_region
      %43 = dma.done [#allocation3], 128
    $region17: #{tpu_custom_call.1} parent=1 // pred_fallthru
      _
    // Predicated region
    $region18: #{tpu_custom_call.1} parent=1 // pred_check
      _
    $region19: #{tpu_custom_call.1} parent=1 // pred_check_branch
      %45 = sbr.rel (0) target = $region21
    $region20: #{tpu_custom_call.1} parent=1 // pred_region
      %46 = dma.done [#allocation6], 256
    $region21: #{tpu_custom_call.1} parent=1 // pred_fallthru
      _
    // Predicated region
    $region22: #{tpu_custom_call.1} parent=1 // pred_check
      _
    $region23: #{tpu_custom_call.1} parent=1 // pred_check_branch
      %48 = sbr.rel (0) target = $region25
    $region24: #{tpu_custom_call.1} parent=1 // pred_region
      %49 = dma.done [#allocation6], 256
    $region25: #{tpu_custom_call.1} parent=1 // pred_fallthru
      _
    %v50 = vld [vmem:[#allocation5] sm:$0xff]
    %v51 = vld [vmem:[#allocation5 + $0x8] sm:$0xff]
    %v52 = vld [vmem:[#allocation7] sm:$0xff]
    %v53 = vld [vmem:[#allocation7 + $0x8] sm:$0xff]
    %v54 = vld [vmem:[#allocation2] sm:$0xff]
    %vm55 = vcmp.ne.s32.totalorder %v54, 0
    %56 = vrot.lane.b32.xlu0 %v50, 1
    %v57 = vpop.permute.xlu0 %56
    %58 = vrot.lane.b32.xlu0 %v51, 1
    %v59 = vpop.permute.xlu0 %58
    %v60 = vlaneseq
    %v61 = vand.u32 %v60, 127
    %vm62 = vcmp.lt.s32.totalorder %v61, 1
    %v63 = vsel %vm62, %v57, %v59
    %v64 = vsel %vm62, %v59, %v57
    %65 = vrot.lane.b32.xlu0 %v50, 127
    %v66 = vpop.permute.xlu0 %65
    %67 = vrot.lane.b32.xlu0 %v51, 127
    %v68 = vpop.permute.xlu0 %67
    %vm69 = vcmp.lt.s32.totalorder %v61, 127
    %v70 = vsel %vm69, %v66, %v68
    %v71 = vsel %vm69, %v68, %v66
    %72 = vrot.lane.b32.xlu0 %v52, 1
    %v73 = vpop.permute.xlu0 %72
    %74 = vrot.lane.b32.xlu0 %v53, 1
    %v75 = vpop.permute.xlu0 %74
    %v76 = vsel %vm62, %v73, %v75
    %v77 = vsel %vm62, %v75, %v73
    %78 = vrot.lane.b32.xlu0 %v52, 127
    %v79 = vpop.permute.xlu0 %78
    %80 = vrot.lane.b32.xlu0 %v53, 127
    %v81 = vpop.permute.xlu0 %80
    %v82 = vsel %vm69, %v79, %v81
    %v83 = vsel %vm69, %v81, %v79
    %v84 = vsel %vm55, 1, 0
    %v85 = vlaneseq
    %v86 = vshrl.u32 %v85, 7
    %v87 = vsub.s32 0, %v86
    %v88 = vrot.slane %v84, %v87
    %v89 = vlaneseq
    %v90 = vshrl.u32 %v89, 7
    %v91 = vsub.s32 4, %v90
    %v92 = vrot.slane %v84, %v91
    %v93 = vlaneseq
    %v94 = vshrl.u32 %v93, 7
    %v95 = vsub.s32 0, %v94
    %v96 = vrot.slane %v88, %v95
    %v97 = vlaneseq
    %v98 = vshrl.u32 %v97, 7
    %v99 = vsub.s32 0, %v98
    %v100 = vrot.slane %v92, %v99
    %vm101 = vcmp.eq.s32.totalorder %v96, 1
    %vm102 = vcmp.eq.s32.totalorder %v100, 1
    %v103 = vsel %vm101, %v70, %v64
    %v104 = vsel %vm102, %v71, %v63
    %v105 = vlaneseq
    %v106 = vshrl.u32 %v105, 7
    %v107 = vsub.s32 1, %v106
    %v108 = vrot.slane %v84, %v107
    %v109 = vlaneseq
    %v110 = vshrl.u32 %v109, 7
    %v111 = vsub.s32 5, %v110
    %v112 = vrot.slane %v84, %v111
    %v113 = vlaneseq
    %v114 = vshrl.u32 %v113, 7
    %v115 = vsub.s32 1, %v114
    %v116 = vrot.slane %v108, %v115
    %v117 = vlaneseq
    %v118 = vshrl.u32 %v117, 7
    %v119 = vsub.s32 1, %v118
    %v120 = vrot.slane %v112, %v119
    %vm121 = vcmp.eq.s32.totalorder %v116, 1
    %vm122 = vcmp.eq.s32.totalorder %v120, 1
    %v123 = vsel %vm121, %v64, %v70
    %v124 = vsel %vm122, %v63, %v71
    %v125 = vsel %vm101, %v82, %v77
    %v126 = vsel %vm102, %v83, %v76
    %v127 = vsel %vm121, %v77, %v82
    %v128 = vsel %vm122, %v76, %v83
    %v129 = vadd.f32 %v50, %v103
    %v130 = vadd.f32 %v51, %v104
    %v131 = vadd.f32 %v129, %v123
    %v132 = vadd.f32 %v130, %v124
    %v133 = vadd.f32 %v52, %v125
    %v134 = vadd.f32 %v53, %v126
    %v135 = vadd.f32 %v133, %v127
    %v136 = vadd.f32 %v134, %v128
    %v137 = vmul.f32 %v50, %v50
    %v138 = vmul.f32 %v51, %v51
    %v139 = vmul.f32 %v103, %v103
    %v140 = vmul.f32 %v104, %v104
    %v141 = vadd.f32 %v137, %v139
    %v142 = vadd.f32 %v138, %v140
    %v143 = vmul.f32 %v123, %v123
    %v144 = vmul.f32 %v124, %v124
    %v145 = vadd.f32 %v141, %v143
    %v146 = vadd.f32 %v142, %v144
    %v147 = vmul.f32 %v52, %v52
    %v148 = vmul.f32 %v53, %v53
    %v149 = vmul.f32 %v125, %v125
    %v150 = vmul.f32 %v126, %v126
    %v151 = vadd.f32 %v147, %v149
    %v152 = vadd.f32 %v148, %v150
    %v153 = vmul.f32 %v127, %v127
    %v154 = vmul.f32 %v128, %v128
    %v155 = vadd.f32 %v151, %v153
    %v156 = vadd.f32 %v152, %v154
    %v157 = vmul.f32 %v50, %v52
    %v158 = vmul.f32 %v51, %v53
    %v159 = vmul.f32 %v103, %v125
    %v160 = vmul.f32 %v104, %v126
    %v161 = vadd.f32 %v157, %v159
    %v162 = vadd.f32 %v158, %v160
    %v163 = vmul.f32 %v123, %v127
    %v164 = vmul.f32 %v124, %v128
    %v165 = vadd.f32 %v161, %v163
    %v166 = vadd.f32 %v162, %v164
    %167 = vrot.lane.b32.xlu0 %v131, 16
    %v168 = vpop.permute.xlu0 %167
    %169 = vrot.lane.b32.xlu0 %v132, 16
    %v170 = vpop.permute.xlu0 %169
    %vm171 = vcmp.lt.s32.totalorder %v61, 16
    %v172 = vsel %vm171, %v168, %v170
    %v173 = vsel %vm171, %v170, %v168
    %174 = vrot.lane.b32.xlu0 %v131, 112
    %v175 = vpop.permute.xlu0 %174
    %176 = vrot.lane.b32.xlu0 %v132, 112
    %v177 = vpop.permute.xlu0 %176
    %vm178 = vcmp.lt.s32.totalorder %v61, 112
    %v179 = vsel %vm178, %v175, %v177
    %v180 = vsel %vm178, %v177, %v175
    %v181 = vlaneseq
    %v182 = vshrl.u32 %v181, 7
    %v183 = vsub.s32 2, %v182
    %v184 = vrot.slane %v84, %v183
    %v185 = vlaneseq
    %v186 = vshrl.u32 %v185, 7
    %v187 = vsub.s32 6, %v186
    %v188 = vrot.slane %v84, %v187
    %v189 = vlaneseq
    %v190 = vshrl.u32 %v189, 7
    %v191 = vsub.s32 2, %v190
    %v192 = vrot.slane %v184, %v191
    %v193 = vlaneseq
    %v194 = vshrl.u32 %v193, 7
    %v195 = vsub.s32 2, %v194
    %v196 = vrot.slane %v188, %v195
    %vm197 = vcmp.eq.s32.totalorder %v192, 1
    %vm198 = vcmp.eq.s32.totalorder %v196, 1
    %v199 = vsel %vm197, %v179, %v173
    %v200 = vsel %vm198, %v180, %v172
    %v201 = vadd.f32 %v131, %v199
    %v202 = vadd.f32 %v132, %v200
    %v203 = vlaneseq
    %v204 = vshrl.u32 %v203, 7
    %v205 = vsub.s32 3, %v204
    %v206 = vrot.slane %v84, %v205
    %v207 = vlaneseq
    %v208 = vshrl.u32 %v207, 7
    %v209 = vsub.s32 7, %v208
    %v210 = vrot.slane %v84, %v209
    %v211 = vlaneseq
    %v212 = vshrl.u32 %v211, 7
    %v213 = vsub.s32 3, %v212
    %v214 = vrot.slane %v206, %v213
    %v215 = vlaneseq
    %v216 = vshrl.u32 %v215, 7
    %v217 = vsub.s32 3, %v216
    %v218 = vrot.slane %v210, %v217
    %vm219 = vcmp.eq.s32.totalorder %v214, 1
    %vm220 = vcmp.eq.s32.totalorder %v218, 1
    %v221 = vsel %vm219, %v173, %v179
    %v222 = vsel %vm220, %v172, %v180
    %v223 = vadd.f32 %v201, %v221
    %v224 = vadd.f32 %v202, %v222
    %225 = vrot.lane.b32.xlu0 %v135, 16
    %v226 = vpop.permute.xlu0 %225
    %227 = vrot.lane.b32.xlu0 %v136, 16
    %v228 = vpop.permute.xlu0 %227
    %v229 = vsel %vm171, %v226, %v228
    %v230 = vsel %vm171, %v228, %v226
    %231 = vrot.lane.b32.xlu0 %v135, 112
    %v232 = vpop.permute.xlu0 %231
    %233 = vrot.lane.b32.xlu0 %v136, 112
    %v234 = vpop.permute.xlu0 %233
    %v235 = vsel %vm178, %v232, %v234
    %v236 = vsel %vm178, %v234, %v232
    %v237 = vsel %vm197, %v235, %v230
    %v238 = vsel %vm198, %v236, %v229
    %v239 = vadd.f32 %v135, %v237
    %v240 = vadd.f32 %v136, %v238
    %v241 = vsel %vm219, %v230, %v235
    %v242 = vsel %vm220, %v229, %v236
    %v243 = vadd.f32 %v239, %v241
    %v244 = vadd.f32 %v240, %v242
    %245 = vrot.lane.b32.xlu0 %v145, 16
    %v246 = vpop.permute.xlu0 %245
    %247 = vrot.lane.b32.xlu0 %v146, 16
    %v248 = vpop.permute.xlu0 %247
    %v249 = vsel %vm171, %v246, %v248
    %v250 = vsel %vm171, %v248, %v246
    %251 = vrot.lane.b32.xlu0 %v145, 112
    %v252 = vpop.permute.xlu0 %251
    %253 = vrot.lane.b32.xlu0 %v146, 112
    %v254 = vpop.permute.xlu0 %253
    %v255 = vsel %vm178, %v252, %v254
    %v256 = vsel %vm178, %v254, %v252
    %v257 = vsel %vm197, %v255, %v250
    %v258 = vsel %vm198, %v256, %v249
    %v259 = vadd.f32 %v145, %v257
    %v260 = vadd.f32 %v146, %v258
    %v261 = vsel %vm219, %v250, %v255
    %v262 = vsel %vm220, %v249, %v256
    %v263 = vadd.f32 %v259, %v261
    %v264 = vadd.f32 %v260, %v262
    %265 = vrot.lane.b32.xlu0 %v155, 16
    %v266 = vpop.permute.xlu0 %265
    %267 = vrot.lane.b32.xlu0 %v156, 16
    %v268 = vpop.permute.xlu0 %267
    %v269 = vsel %vm171, %v266, %v268
    %v270 = vsel %vm171, %v268, %v266
    %271 = vrot.lane.b32.xlu0 %v155, 112
    %v272 = vpop.permute.xlu0 %271
    %273 = vrot.lane.b32.xlu0 %v156, 112
    %v274 = vpop.permute.xlu0 %273
    %v275 = vsel %vm178, %v272, %v274
    %v276 = vsel %vm178, %v274, %v272
    %v277 = vsel %vm197, %v275, %v270
    %v278 = vsel %vm198, %v276, %v269
    %v279 = vadd.f32 %v155, %v277
    %v280 = vadd.f32 %v156, %v278
    %v281 = vsel %vm219, %v270, %v275
    %v282 = vsel %vm220, %v269, %v276
    %v283 = vadd.f32 %v279, %v281
    %v284 = vadd.f32 %v280, %v282
    %285 = vrot.lane.b32.xlu0 %v165, 16
    %v286 = vpop.permute.xlu0 %285
    %287 = vrot.lane.b32.xlu0 %v166, 16
    %v288 = vpop.permute.xlu0 %287
    %v289 = vsel %vm171, %v286, %v288
    %v290 = vsel %vm171, %v288, %v286
    %291 = vrot.lane.b32.xlu0 %v165, 112
    %v292 = vpop.permute.xlu0 %291
    %293 = vrot.lane.b32.xlu0 %v166, 112
    %v294 = vpop.permute.xlu0 %293
    %v295 = vsel %vm178, %v292, %v294
    %v296 = vsel %vm178, %v294, %v292
    %v297 = vsel %vm197, %v295, %v290
    %v298 = vsel %vm198, %v296, %v289
    %v299 = vadd.f32 %v165, %v297
    %v300 = vadd.f32 %v166, %v298
    %v301 = vsel %vm219, %v290, %v295
    %v302 = vsel %vm220, %v289, %v296
    %v303 = vadd.f32 %v299, %v301
    %v304 = vadd.f32 %v300, %v302
    %v305 = vmul.f32 %v223, %v243
    %v306 = vmul.f32 %v224, %v244
    %v307 = vmul.f32 %v223, %v223
    %v308 = vmul.f32 %v224, %v224
    %v309 = vmul.f32 %v243, %v243
    %v310 = vmul.f32 %v244, %v244
    %v311 = vadd.f32 %v307, %v309
    %v312 = vadd.f32 %v308, %v310
    %v313 = vmul.f32 %v305, 0.024691358
    %v314 = vmul.f32 %v306, 0.024691358
    %v315 = vmul.f32 %v311, 0.012345679
    %v316 = vmul.f32 %v312, 0.012345679
    %v317 = vadd.f32 %v313, 0.0001
    %v318 = vadd.f32 %v314, 0.0001
    %v319 = vmul.f32 %v303, 0.22222222
    %v320 = vmul.f32 %v304, 0.22222222
    %v321 = vsub.f32 %v319, %v313
    %v322 = vsub.f32 %v320, %v314
    %v323 = vadd.f32 %v321, 0.0009
    %v324 = vadd.f32 %v322, 0.0009
    %v325 = vmul.f32 %v317, %v323
    %v326 = vmul.f32 %v318, %v324
    %v327 = vadd.f32 %v315, 0.0001
    %v328 = vadd.f32 %v316, 0.0001
    %v329 = vadd.f32 %v263, %v283
    %v330 = vadd.f32 %v264, %v284
    %v331 = vmul.f32 %v329, 0.11111111
    %v332 = vmul.f32 %v330, 0.11111111
    %v333 = vsub.f32 %v331, %v315
    %v334 = vsub.f32 %v332, %v316
    %v335 = vadd.f32 %v333, 0.0009
    %v336 = vadd.f32 %v334, 0.0009
    %v337 = vmul.f32 %v327, %v335
    %v338 = vmul.f32 %v328, %v336
    %v339 = vrcp.pop %v337
    %v340 = vrcp.pop %v338
    %v341 = vmul.f32 %v337, %v339
    %v342 = vmul.f32 %v338, %v340
    %v343 = vsub.f32 2.0, %v341
    %v344 = vsub.f32 2.0, %v342
    %v345 = vmul.f32 %v339, %v343
    %v346 = vmul.f32 %v340, %v344
    %v347 = vmul.f32 %v325, %v345
    %v348 = vmul.f32 %v326, %v346
    %v349 = vsub.f32 1.0, %v347
    %v350 = vsub.f32 1.0, %v348
    %v351 = vmul.f32 %v349, 0.5
    %v352 = vmul.f32 %v350, 0.5
    %v353 = vmax.f32 %v351, 0.0
    %v354 = vmax.f32 %v352, 0.0
    %v355 = vmin.f32 %v353, 1.0
    %v356 = vmin.f32 %v354, 1.0
    %357 = vst [vmem:[#allocation8] sm:$0xff] %v355
    %358 = vst [vmem:[#allocation8 + $0x8] sm:$0xff] %v356
    // Predicated region
    $region26: #{tpu_custom_call.1} parent=1 // pred_check
      _
    $region27: #{tpu_custom_call.1} parent=1 // pred_check_branch
      %360 = sbr.rel (0) target = $region29
    $region28: #{tpu_custom_call.1} parent=1 // pred_region
      %s362 = ssub.s32 256, 256
      %363 = vsyncadd [#allocation4], %s362
      %s365 = sshll.u32 [#allocation8], 4
      %s366 = int_to_ptr.vmem [resolvable:$true] %s365
      %368 = dma.vmem_to_hbm [thread:$0]  %s366, 256, %s3, [#allocation4]
    $region29: #{tpu_custom_call.1} parent=1 // pred_fallthru
      _
    // Predicated region
    $region30: #{tpu_custom_call.1} parent=1 // pred_check
      _
    $region31: #{tpu_custom_call.1} parent=1 // pred_check_branch
      %370 = sbr.rel (0) target = $region33
    $region32: #{tpu_custom_call.1} parent=1 // pred_region
      %371 = dma.done [#allocation4], 256
    $region33: #{tpu_custom_call.1} parent=1 // pred_fallthru
      _
    %372 = vsyncpa [#allocation3], 1
    %373 = vsyncpa [#allocation6], 1
    %374 = vsyncpa [#allocation4], 1

</llo_original>
